<compile_context>
chip_gen: v5e
topology: v5e:2x2
jax: 0.10.0
libtpu: 0.0.40
codegen_flags: <defaults>
</compile_context>

<pallas_src>
import functools

import jax
import jax.numpy as jnp
from jax import lax
from jax.experimental import pallas as pl
from jax.experimental.pallas import tpu as pltpu

_LANE = 128


def _se_kernel(x_ref, w1_ref, w2_ref, o_ref, *, inv_hw):
    # x_ref : (B_blk, C, HW_pad)  activations (f32 or bf16 stream dtype)
    # w1_ref: (C_red, C)          first Linear weight (torch layout: out x in)
    # w2_ref: (C, C_red)          second Linear weight
    x = x_ref[...]
    xf = x.astype(jnp.float32)                       # compute in f32 (v5e VPU has no bf16)

    # -- squeeze: global average pool (sum over lanes, divide by the TRUE H*W,
    #    so zero-padded lanes do not bias the mean) --
    mean = jnp.sum(xf, axis=-1) * inv_hw             # (B_blk, C)

    # -- excitation: Linear -> ReLU -> Linear -> Sigmoid, no transposes:
    #    contract directly on the C / C_red axes of the torch-layout weights --
    h = lax.dot_general(mean, w1_ref[...], (((1,), (1,)), ((), ())),
                        preferred_element_type=jnp.float32)        # (B_blk, C_red)
    h = jnp.maximum(h, 0.0)
    s = lax.dot_general(h, w2_ref[...], (((1,), (1,)), ((), ())),
                        preferred_element_type=jnp.float32)        # (B_blk, C)
    s = jax.nn.sigmoid(s)

    # -- scale: per-(b, c) gate broadcast along the lane (HW) axis --
    o_ref[...] = (xf * s[:, :, None]).astype(o_ref.dtype)


def _pick_batch_block(B, C, HW_pad, itemsize, budget_bytes=24 << 20):
    """Largest B_blk whose double-buffered in+out slabs fit the VMEM budget,
    while keeping >=2 grid steps when B >= 2 (so both v7x TensorCores get work)."""
    per_b = 4 * C * HW_pad * itemsize                # in + out, each double-buffered
    b_blk = max(1, budget_bytes // per_b)
    if B >= 2:
        b_blk = min(b_blk, pl.cdiv(B, 2))
    return int(min(b_blk, B))


def se_block(x_nchw, w1, w2, *, stream_dtype=None, block_batch=None):
    """SeBlock forward.

    x_nchw: (B, C, H, W); w1: (C//r, C); w2: (C, C//r)  (torch nn.Linear, bias=False).
    stream_dtype: optional dtype for the HBM<->VMEM activation stream (e.g. bf16
    to halve HBM traffic on this memory-bound op); compute is always f32.
    """
    B, C, H, W = x_nchw.shape
    HW = H * W
    HW_pad = pl.cdiv(HW, _LANE) * _LANE              # lane-dense output slab
    dtype = jnp.dtype(stream_dtype) if stream_dtype is not None else x_nchw.dtype
    itemsize = dtype.itemsize

    x = x_nchw.reshape(B, C, HW).astype(dtype)
    if HW_pad != HW:
        x = jnp.pad(x, ((0, 0), (0, 0), (0, HW_pad - HW)))

    w1 = w1.astype(jnp.float32)
    w2 = w2.astype(jnp.float32)
    C_red = w1.shape[0]

    b_blk = block_batch if block_batch is not None else _pick_batch_block(B, C, HW_pad, itemsize)
    grid = (pl.cdiv(B, b_blk),)

    # VMEM budget: in + out blocks (double-buffered) + weights + margin.
    blk_bytes = 4 * b_blk * C * HW_pad * itemsize
    w_bytes = (w1.size + w2.size) * 4
    vmem_limit = int(min(96 << 20, max(32 << 20, blk_bytes + w_bytes + (4 << 20))))

    # Purely HBM-streaming op: tell XLA the real byte traffic.
    cost = pl.CostEstimate(
        flops=int(2 * B * C * HW + 4 * B * C * C_red),
        transcendentals=int(B * C),
        bytes_accessed=int(2 * B * C * HW_pad * itemsize + w_bytes),
    )

    kernel = functools.partial(_se_kernel, inv_hw=float(1.0 / HW))

    # NOTE: input_output_aliases={0: 0} could reuse the streamed-x HBM buffer for
    # the output on very large feature maps; skipped here since the wrapper's
    # pad/cast already makes x a temporary and donation adds no value at this size.
    out = pl.pallas_call(
        kernel,
        out_shape=jax.ShapeDtypeStruct((B, C, HW_pad), dtype),
        grid_spec=pltpu.PrefetchScalarGridSpec(
            num_scalar_prefetch=0,
            grid=grid,
            in_specs=[
                pl.BlockSpec((b_blk, C, HW_pad), lambda b: (b, 0, 0)),
                pl.BlockSpec(w1.shape, lambda b: (0, 0)),
                pl.BlockSpec(w2.shape, lambda b: (0, 0)),
            ],
            out_specs=pl.BlockSpec((b_blk, C, HW_pad), lambda b: (b, 0, 0)),
        ),
        compiler_params=pltpu.CompilerParams(
            dimension_semantics=("parallel",),
            vmem_limit_bytes=vmem_limit,
        ),
        cost_estimate=cost,
    )(x, w1, w2)

    return out[:, :, :HW].reshape(B, C, H, W)


def se_block_ref(x, w1, w2):
    # pure-JAX reference matching the PyTorch forward (bias=False Linears)
    y = jnp.mean(x, axis=(2, 3))                     # (B, C)
    h = jnp.maximum(y @ w1.T, 0.0)                   # (B, C_red)
    s = jax.nn.sigmoid(h @ w2.T)                     # (B, C)
    return x * s[:, :, None, None]


if __name__ == "__main__":
    B, C, H, W = 2, 32, 16, 16
    reduction = 16
    C_red = C // reduction

    key = jax.random.PRNGKey(0)
    kx, k1, k2 = jax.random.split(key, 3)
    x = jax.random.normal(kx, (B, C, H, W), dtype=jnp.float32)
    # torch nn.Linear layout: (out_features, in_features), bias=False per the module
    w1 = jax.random.normal(k1, (C_red, C), dtype=jnp.float32) * 0.1
    w2 = jax.random.normal(k2, (C, C_red), dtype=jnp.float32) * 0.1

    # f32 path (matches module semantics exactly)
    out = jax.block_until_ready(se_block(x, w1, w2))
    ref = se_block_ref(x, w1, w2)
    assert out.shape == (B, C, H, W)
    assert jnp.allclose(out, ref, atol=1e-5, rtol=1e-5)

    # bf16-streamed path (halves HBM traffic; compute stays f32 in-kernel)
    out_bf = jax.block_until_ready(se_block(x, w1, w2, stream_dtype=jnp.bfloat16))
    assert jnp.allclose(out_bf.astype(jnp.float32), ref, atol=5e-2, rtol=5e-2)

    # non-multiple-of-128 spatial size exercises lane padding + true-HW mean
    x2 = jax.random.normal(kx, (B, C, 7, 7), dtype=jnp.float32)
    out2 = jax.block_until_ready(se_block(x2, w1, w2))
    assert jnp.allclose(out2, se_block_ref(x2, w1, w2), atol=1e-5, rtol=1e-5)

    print("KERNEL_OK")
</pallas_src>

<mosaic_0001>
module attributes {stable_mosaic.version = 11 : i64} {
  func.func @_se_kernel(%arg0: i32, %arg1: memref<1x32x256xf32, #tpu.memory_space<vmem>>, %arg2: memref<2x32xf32, #tpu.memory_space<vmem>>, %arg3: memref<32x2xf32, #tpu.memory_space<vmem>>, %arg4: memref<1x32x256xf32, #tpu.memory_space<vmem>>) attributes {dimension_semantics = [#tpu.dimension_semantics<parallel>], iteration_bounds = array<i64: 2>, scalar_prefetch = 0 : i64, scratch_operands = 0 : i64, tpu.core_type = #tpu.core_type<tc>, window_params = [{transform_indices = @transform_0, window_bounds = array<i64: 1, 32, 256>}, {pipeline_mode = #tpu.pipeline_mode<synchronous>, transform_indices = @transform_1, window_bounds = array<i64: 2, 32>}, {pipeline_mode = #tpu.pipeline_mode<synchronous>, transform_indices = @transform_2, window_bounds = array<i64: 32, 2>}, {transform_indices = @transform_3, window_bounds = array<i64: 1, 32, 256>}]} {
    %c0 = arith.constant 0 : index
    %c0_0 = arith.constant 0 : index
    %c0_1 = arith.constant 0 : index
    %0 = vector.load %arg1[%c0, %c0_0, %c0_1] : memref<1x32x256xf32, #tpu.memory_space<vmem>>, vector<1x32x256xf32>
    %cst = arith.constant dense<0.000000e+00> : vector<1x32xf32>
    %1 = vector.multi_reduction <add>, %0, %cst [2] : vector<1x32x256xf32> to vector<1x32xf32>
    %cst_2 = arith.constant 3.906250e-03 : f32
    %2 = vector.broadcast %cst_2 : f32 to vector<1x32xf32>
    %3 = arith.mulf %1, %2 : vector<1x32xf32>
    %c0_3 = arith.constant 0 : index
    %c0_4 = arith.constant 0 : index
    %4 = vector.load %arg2[%c0_3, %c0_4] : memref<2x32xf32, #tpu.memory_space<vmem>>, vector<2x32xf32>
    %cst_5 = arith.constant dense<0.000000e+00> : vector<1x2xf32>
    %5 = tpu.matmul %3, %4, %cst_5 {dimension_numbers = #tpu.dot_dimension_numbers<[1], [1], [0], [0], [0, 0, 1, 0], [], []>} : vector<1x32xf32>, vector<2x32xf32>, vector<1x2xf32> -> vector<1x2xf32>
    %cst_6 = arith.constant 0.000000e+00 : f32
    %6 = vector.broadcast %cst_6 : f32 to vector<1x2xf32>
    %7 = arith.maximumf %5, %6 : vector<1x2xf32>
    %c0_7 = arith.constant 0 : index
    %c0_8 = arith.constant 0 : index
    %8 = vector.load %arg3[%c0_7, %c0_8] : memref<32x2xf32, #tpu.memory_space<vmem>>, vector<32x2xf32>
    %cst_9 = arith.constant dense<0.000000e+00> : vector<1x32xf32>
    %9 = tpu.matmul %7, %8, %cst_9 {dimension_numbers = #tpu.dot_dimension_numbers<[1], [1], [0], [0], [0, 0, 1, 0], [], []>} : vector<1x2xf32>, vector<32x2xf32>, vector<1x32xf32> -> vector<1x32xf32>
    %10 = arith.negf %9 : vector<1x32xf32>
    %11 = math.exp %10 : vector<1x32xf32>
    %cst_10 = arith.constant 1.000000e+00 : f32
    %12 = vector.broadcast %cst_10 : f32 to vector<1x32xf32>
    %13 = arith.addf %12, %11 : vector<1x32xf32>
    %14 = arith.divf %12, %13 : vector<1x32xf32>
    %15 = vector.shape_cast %14 : vector<1x32xf32> to vector<1x32x1xf32>
    %16 = vector.broadcast %15 : vector<1x32x1xf32> to vector<1x32x256xf32>
    %17 = arith.mulf %0, %16 : vector<1x32x256xf32>
    %c0_11 = arith.constant 0 : index
    %c0_12 = arith.constant 0 : index
    %c0_13 = arith.constant 0 : index
    %18 = vector.load %arg4[%c0_11, %c0_12, %c0_13] : memref<1x32x256xf32, #tpu.memory_space<vmem>>, vector<1x32x256xf32>
    tpu.vector_store %arg4[%c0_11, %c0_12, %c0_13], %17 {strides = array<i32>} : memref<1x32x256xf32, #tpu.memory_space<vmem>>, vector<1x32x256xf32>,
    return
  }
  func.func @transform_0(%arg0: i32) -> (i32, i32, i32) {
    %c0_i32 = arith.constant 0 : i32
    %c0_i32_0 = arith.constant 0 : i32
    %c0_i32_1 = arith.constant 0 : i32
    return %arg0, %c0_i32, %c0_i32_0 : i32, i32, i32
  }
  func.func @transform_1(%arg0: i32) -> (i32, i32) {
    %c0_i32 = arith.constant 0 : i32
    %c0_i32_0 = arith.constant 0 : i32
    %c0_i32_1 = arith.constant 0 : i32
    return %c0_i32, %c0_i32_0 : i32, i32
  }
  func.func @transform_2(%arg0: i32) -> (i32, i32) {
    %c0_i32 = arith.constant 0 : i32
    %c0_i32_0 = arith.constant 0 : i32
    %c0_i32_1 = arith.constant 0 : i32
    return %c0_i32, %c0_i32_0 : i32, i32
  }
  func.func @transform_3(%arg0: i32) -> (i32, i32, i32) {
    %c0_i32 = arith.constant 0 : i32
    %c0_i32_0 = arith.constant 0 : i32
    %c0_i32_1 = arith.constant 0 : i32
    return %arg0, %c0_i32, %c0_i32_0 : i32, i32, i32
  }
}

</mosaic_0001>

<llo_original>
// kernel: tpu_custom_call.1
$region0: #{tpu_custom_call.1}
  #allocation0 [shape = 'u32[]', space=smem, size = 0x4, offset = 0x4, fixed_abs, tag = 'smem constant byte address 0x4 - core index']
  #allocation1 [shape = 'u32[72,128]{1,0:T(1,128)}', space=vmem, size = 0x9000, scoped, tag = 'internal scratch']
  %s0 = inlined_call_operand.hbm [shape: f32[2,32,256], index: 0, kind: input, shape index: {}]
  %s1 = inlined_call_operand.vmem [shape: f32[2,32], index: 1, kind: input, shape index: {}]
  %s2 = inlined_call_operand.vmem [shape: f32[32,2], index: 2, kind: input, shape index: {}]
  %s3 = inlined_call_operand.hbm [shape: f32[2,32,256], index: 3, kind: output, shape index: {}]
  %s4 = sld [smem:[#allocation0]]
  $region49: #{tpu_custom_call.1} parent=0
    _
  %s6 = ssub.s32 1, %s4
  %s7 = scalar_select 0, %s6, %s4
  $region1: #{tpu_custom_call.1} parent=0
    #allocation2 [shape = 'u8[65536]{0}', space=vmem, size = 0x10000, scoped, tag = 'input window, operand 0']
    #allocation3 [shape = 's32[2]{0}', space=sflag, size = 0x8, scoped, tag = 'scoped memory for tpu_custom_call.1']
    #allocation4 [shape = 's32[2]{0}', space=sflag, size = 0x8, scoped, tag = 'scoped memory for tpu_custom_call.1']
    #allocation5 [shape = 'u8[65536]{0}', space=vmem, size = 0x10000, scoped, tag = 'output window, operand 0']
    %8 = vsyncpa [#allocation3], 0
    %s9 = scalar_lea.sflag [#allocation3], 1
    %10 = vsyncpa %s9, 0
    %11 = vsyncpa [#allocation4], 0
    %s12 = scalar_lea.sflag [#allocation4], 1
    %13 = vsyncpa %s12, 0
    loop: start=0, step=1, limit=4
    $region2: #{tpu_custom_call.1} parent=1 // loop_pre_header
      _
    $region3: #{tpu_custom_call.1} parent=1 // loop_header
      %s15 = sphi 0, %s19
      %p16 = scmp.ge.s32.totalorder %s15, 4
      %s25 = sphi 0, %s27
      %s28 = sphi 0, %s25
      %s29 = sphi 0, %s28
      %s45 = sphi 0, %s29
      %s49 = sphi 0, %s49
      %s51 = sphi 0, %s49
      %s52 = sphi 0, %s51
      %s66 = sphi 0, %s52
      %s70 = sphi 0, %s70
      %s72 = sphi 0, %s70
      %s73 = sphi 0, %s72
      %s87 = sphi 0, %s73
      %s93 = sphi 0, %s95
      %s96 = sphi 0, %s93
      %s97 = sphi 0, %s96
      %s113 = sphi 0, %s97
    $region4: #{tpu_custom_call.1} parent=1 // loop_header_branch
      %18 = sbr.rel (%p16) target = $region8
    $region5: #{tpu_custom_call.1} parent=1 // loop_body
      %s20 = ssub.s32 %s15, 1
      %s21 = ssub.s32 %s15, 2
      %s22 = sadd.s32 %s15, 1
      %s23 = ssub.s32 %s15, %s22
      %p24 = scmp.eq.s32.totalorder %s23, 0
      %s26 = sadd.s32 %s25, 1
      %s27 = scalar_select %p24, %s25, %s26
      %p30 = pneg %p24
      %p31 = scmp.eq.s32.totalorder %s15, 1
      %p32 = por %p30, %p31
      %p33 = scmp.ne.s32.totalorder %s25, %s28
      %p34 = scmp.eq.s32.totalorder %s15, 0
      %p35 = por %p33, %p34
      %p36 = scmp.ne.s32.totalorder %s25, %s28
      %p37 = scmp.eq.s32.totalorder %s20, 1
      %p38 = por %p36, %p37
      %p39 = scmp.ne.s32.totalorder %s28, %s29
      %p40 = scmp.eq.s32.totalorder %s20, 0
      %p41 = por %p39, %p40
      %p42 = scmp.ne.s32.totalorder %s28, %s29
      %p43 = scmp.eq.s32.totalorder %s21, 1
      %p44 = por %p42, %p43
      %p46 = scmp.ne.s32.totalorder %s29, %s45
      %p47 = scmp.eq.s32.totalorder %s21, 0
      %p48 = por %p46, %p47
      %s50 = sadd.s32 %s49, 1
      %p53 = scmp.eq.s32.totalorder %s15, 1
      %p54 = scmp.ne.s32.totalorder %s49, %s51
      %p55 = scmp.eq.s32.totalorder %s15, 0
      %p56 = por %p54, %p55
      %p57 = scmp.ne.s32.totalorder %s49, %s51
      %p58 = scmp.eq.s32.totalorder %s20, 1
      %p59 = por %p57, %p58
      %p60 = scmp.ne.s32.totalorder %s51, %s52
      %p61 = scmp.eq.s32.totalorder %s20, 0
      %p62 = por %p60, %p61
      %p63 = scmp.ne.s32.totalorder %s51, %s52
      %p64 = scmp.eq.s32.totalorder %s21, 1
      %p65 = por %p63, %p64
      %p67 = scmp.ne.s32.totalorder %s52, %s66
      %p68 = scmp.eq.s32.totalorder %s21, 0
      %p69 = por %p67, %p68
      %s71 = sadd.s32 %s70, 1
      %p74 = scmp.eq.s32.totalorder %s15, 1
      %p75 = scmp.ne.s32.totalorder %s70, %s72
      %p76 = scmp.eq.s32.totalorder %s15, 0
      %p77 = por %p75, %p76
      %p78 = scmp.ne.s32.totalorder %s70, %s72
      %p79 = scmp.eq.s32.totalorder %s20, 1
      %p80 = por %p78, %p79
      %p81 = scmp.ne.s32.totalorder %s72, %s73
      %p82 = scmp.eq.s32.totalorder %s20, 0
      %p83 = por %p81, %p82
      %p84 = scmp.ne.s32.totalorder %s72, %s73
      %p85 = scmp.eq.s32.totalorder %s21, 1
      %p86 = por %p84, %p85
      %p88 = scmp.ne.s32.totalorder %s73, %s87
      %p89 = scmp.eq.s32.totalorder %s21, 0
      %p90 = por %p88, %p89
      %s91 = ssub.s32 %s15, %s22
      %p92 = scmp.eq.s32.totalorder %s91, 0
      %s94 = sadd.s32 %s93, 1
      %s95 = scalar_select %p92, %s93, %s94
      %p98 = pneg %p92
      %p99 = scmp.eq.s32.totalorder %s15, 1
      %p100 = por %p98, %p99
      %p101 = scmp.ne.s32.totalorder %s93, %s96
      %p102 = scmp.eq.s32.totalorder %s15, 0
      %p103 = por %p101, %p102
      %p104 = scmp.ne.s32.totalorder %s93, %s96
      %p105 = scmp.eq.s32.totalorder %s20, 1
      %p106 = por %p104, %p105
      %p107 = scmp.ne.s32.totalorder %s96, %s97
      %p108 = scmp.eq.s32.totalorder %s20, 0
      %p109 = por %p107, %p108
      %p110 = scmp.ne.s32.totalorder %s96, %s97
      %p111 = scmp.eq.s32.totalorder %s21, 1
      %p112 = por %p110, %p111
      %p114 = scmp.ne.s32.totalorder %s97, %s113
      %p115 = scmp.eq.s32.totalorder %s21, 0
      %p116 = por %p114, %p115
      %p117 = scmp.le.s32.totalorder 1, %s15
      %p118 = scmp.lt.s32.totalorder %s15, 3
      %p119 = pnand %p117, %p118
      %p120 = pneg %p119
      // Predicated region
      $region9: #{tpu_custom_call.1} parent=5 // pred_check
        _
      $region10: #{tpu_custom_call.1} parent=5 // pred_check_branch
        %122 = sbr.rel (%p119) target = $region12
      $region11: #{tpu_custom_call.1} parent=5 // pred_region
        %s123 = ssub.s32 %s15, 1
        // Predicated region
        $region13: #{tpu_custom_call.1} parent=11 // pred_check
          %p124 = pneg %p62
        $region14: #{tpu_custom_call.1} parent=11 // pred_check_branch
          %126 = sbr.rel (%p124) target = $region16
        $region15: #{tpu_custom_call.1} parent=11 // pred_region
          _
        $region16: #{tpu_custom_call.1} parent=11 // pred_fallthru
          _
        // Predicated region
        $region17: #{tpu_custom_call.1} parent=11 // pred_check
          %p127 = pneg %p83
        $region18: #{tpu_custom_call.1} parent=11 // pred_check_branch
          %129 = sbr.rel (%p127) target = $region20
        $region19: #{tpu_custom_call.1} parent=11 // pred_region
          _
        $region20: #{tpu_custom_call.1} parent=11 // pred_fallthru
          _
      $region12: #{tpu_custom_call.1} parent=5 // pred_fallthru
        _
      %p130 = scmp.lt.s32.totalorder %s15, 2
      // Predicated region
      $region21: #{tpu_custom_call.1} parent=5 // pred_check
        %p131 = pneg %p130
      $region22: #{tpu_custom_call.1} parent=5 // pred_check_branch
        %133 = sbr.rel (%p131) target = $region24
      $region23: #{tpu_custom_call.1} parent=5 // pred_region
        // Predicated region
        $region25: #{tpu_custom_call.1} parent=23 // pred_check
          %p134 = pneg %p35
        $region26: #{tpu_custom_call.1} parent=23 // pred_check_branch
          %136 = sbr.rel (%p134) target = $region28
        $region27: #{tpu_custom_call.1} parent=23 // pred_region
          %s137 = sand.u32 %s25, 1
          %s138 = scalar_lea.sflag [#allocation3], %s137
          %s139 = sand.u32 %s25, 1
          %s140 = smul.addr %s139, 64
          %s141 = scalar_lea.vmem [#allocation2], %s140
          %143 = vsyncadd %s138, 0
          %s144 = smul.addr %s15, 8
          %s145 = smul.addr %s144, 8
          %s146 = scalar_lea.hbm %s0, %s145
          %s147 = sshll.u32 %s146, 4
          %s148 = int_to_ptr.hbm [resolvable:$true] %s147
          %s149 = sshll.u32 %s141, 4
          %s150 = int_to_ptr.vmem [resolvable:$true] %s149
          %155 = dma.hbm_to_vmem [thread:$0]  %s148, 1024, %s150, %s138, 256, 256, 16
        $region28: #{tpu_custom_call.1} parent=23 // pred_fallthru
          _
      $region24: #{tpu_custom_call.1} parent=5 // pred_fallthru
        _
      %p156 = scmp.le.s32.totalorder 1, %s15
      %p157 = scmp.lt.s32.totalorder %s15, 3
      %p158 = pnand %p156, %p157
      %p159 = pneg %p158
      // Predicated region
      $region29: #{tpu_custom_call.1} parent=5 // pred_check
        _
      $region30: #{tpu_custom_call.1} parent=5 // pred_check_branch
        %161 = sbr.rel (%p158) target = $region32
      $region31: #{tpu_custom_call.1} parent=5 // pred_region
        %s162 = ssub.s32 %s15, 1
        %s163 = sand.u32 %s28, 1
        %s164 = scalar_lea.sflag [#allocation3], %s163
        %s165 = sand.u32 %s28, 1
        %s166 = smul.addr %s165, 64
        %s167 = scalar_lea.vmem [#allocation2], %s166
        // Predicated region
        $region33: #{tpu_custom_call.1} parent=31 // pred_check
          %p168 = pneg %p41
        $region34: #{tpu_custom_call.1} parent=31 // pred_check_branch
          %170 = sbr.rel (%p168) target = $region36
        $region35: #{tpu_custom_call.1} parent=31 // pred_region
          %172 = dma.done %s164, 1024
        $region36: #{tpu_custom_call.1} parent=31 // pred_fallthru
          _
        %s173 = sand.u32 %s28, 1
        %s174 = scalar_lea.sflag [#allocation3], %s173
        %s175 = sand.u32 %s28, 1
        %s176 = smul.addr %s175, 64
        %s177 = scalar_lea.vmem [#allocation2], %s176
        %p178 = pneg %p41
        %p179 = pneg %p38
        %p180 = pneg %p62
        %p181 = pneg %p59
        %p182 = pneg %p83
        %p183 = pneg %p80
        %p184 = pneg %p109
        %p185 = pneg %p106
        %s186 = sand.u32 %s96, 1
        %s187 = scalar_lea.sflag [#allocation4], %s186
        %s188 = sand.u32 %s96, 1
        %s189 = smul.addr %s188, 64
        %s190 = scalar_lea.vmem [#allocation5], %s189
        %v191 = vld [vmem:[%s167] sm:$0xff]
        %v192 = vld [vmem:[%s167 + $0x8] sm:$0xff]
        %v193 = vld [vmem:[%s167 + $0x10] sm:$0xff]
        %v194 = vld [vmem:[%s167 + $0x18] sm:$0xff]
        %v195 = vld [vmem:[%s167 + $0x20] sm:$0xff]
        %v196 = vld [vmem:[%s167 + $0x28] sm:$0xff]
        %v197 = vld [vmem:[%s167 + $0x30] sm:$0xff]
        %v198 = vld [vmem:[%s167 + $0x38] sm:$0xff]
        %v199 = vadd.f32 %v191, %v192
        %200 = vadd.xlane.f32.xlu0 %v199
        %v201 = vpop.xlane.xlu0 %200
        %v202 = vadd.f32 %v193, %v194
        %203 = vadd.xlane.f32.xlu0 %v202
        %v204 = vpop.xlane.xlu0 %203
        %v205 = vadd.f32 %v195, %v196
        %206 = vadd.xlane.f32.xlu0 %v205
        %v207 = vpop.xlane.xlu0 %206
        %v208 = vadd.f32 %v197, %v198
        %209 = vadd.xlane.f32.xlu0 %v208
        %v210 = vpop.xlane.xlu0 %209
        %v211 = vmul.f32 %v201, 0.00390625
        %v212 = vmul.f32 %v204, 0.00390625
        %v213 = vmul.f32 %v207, 0.00390625
        %v214 = vmul.f32 %v210, 0.00390625
        %v215 = vld [vmem:[%s1] sm:$0x3]
        %v220 = vlaneseq
        %v221 = vand.u32 %v220, 127
        %v222 = vperm.slane %v211, %v221
        %v223 = vadd.s32 %v221, 4294967288
        %v224 = vperm.slane %v212, %v223
        %vm225 = vcmask 130112
        %v226 = vsel %vm225, %v224, %v222
        %v227 = vadd.s32 %v221, 4294967280
        %v228 = vperm.slane %v213, %v227
        %vm229 = vcmask 195712
        %v230 = vsel %vm229, %v228, %v226
        %v231 = vadd.s32 %v221, 4294967272
        %v232 = vperm.slane %v214, %v231
        %vm233 = vcmask 261312
        %v234 = vsel %vm233, %v232, %v230
        %vm235 = vcmask 261120
        %v236 = vsel %vm235, %v234, 0
        %v239 = vsel %vm235, %v215, 0
        %241 = vmatpush.xpose.msra.mxu0 0.0
        %242 = vmatpush.xpose.msra.mxu0 0.0
        %243 = vmatpush.xpose.msra.mxu0 0.0
        %244 = vmatpush.xpose.msra.mxu0 0.0
        %245 = vmatpush.xpose.msra.mxu0 0.0
        %246 = vmatpush.xpose.msra.mxu0 0.0
        %247 = vmatpush.xpose.msra.mxu0 0.0
        %248 = vmatpush.xpose.msra.mxu0 0.0
        %249 = vmatpush.xpose.msra.mxu0 0.0
        %250 = vmatpush.xpose.msra.mxu0 0.0
        %251 = vmatpush.xpose.msra.mxu0 0.0
        %252 = vmatpush.xpose.msra.mxu0 0.0
        %253 = vmatpush.xpose.msra.mxu0 0.0
        %254 = vmatpush.xpose.msra.mxu0 0.0
        %255 = vmatpush.xpose.msra.mxu0 0.0
        %256 = vmatpush.xpose.msra.mxu0 %v239
        %257 = vmatmul.f32.gmra.mxu0 %v236
        %v258 = vpop.f32.mrf.mxu0
        %v259 = vadd.f32 0.0, %v258
        %260 = vdwg.mxu0
        %v261 = vmax.f32 %v259, 0.0
        %v262 = vld [vmem:[%s2] sm:$0xff]
        %v263 = vld [vmem:[%s2 + $0x8] sm:$0xff]
        %v264 = vld [vmem:[%s2 + $0x10] sm:$0xff]
        %v265 = vld [vmem:[%s2 + $0x18] sm:$0xff]
        %vm266 = vcmask 15360
        %v268 = vsel %vm266, %v261, 0
        %v271 = vsel %vm266, %v262, 0
        %v274 = vsel %vm266, %v263, 0
        %v277 = vsel %vm266, %v264, 0
        %v280 = vsel %vm266, %v265, 0
        %282 = vmatpush.xpose.msra.mxu0 0.0
        %283 = vmatpush.xpose.msra.mxu0 0.0
        %284 = vmatpush.xpose.msra.mxu0 0.0
        %285 = vmatpush.xpose.msra.mxu0 0.0
        %286 = vmatpush.xpose.msra.mxu0 0.0
        %287 = vmatpush.xpose.msra.mxu0 0.0
        %288 = vmatpush.xpose.msra.mxu0 0.0
        %289 = vmatpush.xpose.msra.mxu0 0.0
        %290 = vmatpush.xpose.msra.mxu0 0.0
        %291 = vmatpush.xpose.msra.mxu0 0.0
        %292 = vmatpush.xpose.msra.mxu0 0.0
        %293 = vmatpush.xpose.msra.mxu0 0.0
        %294 = vmatpush.xpose.msra.mxu0 %v280
        %295 = vmatpush.xpose.msra.mxu0 %v277
        %296 = vmatpush.xpose.msra.mxu0 %v274
        %297 = vmatpush.xpose.msra.mxu0 %v271
        %298 = vmatmul.f32.gmra.mxu0 %v268
        %v299 = vpop.f32.mrf.mxu0
        %v300 = vadd.f32 0.0, %v299
        %301 = vdwg.mxu0
        %v302 = vxor.u32 %v300, 2147483648
        %v303 = vmul.f32 %v302, 1.442695
        %v304 = vpow.pop %v303
        %v305 = vadd.f32 %v304, 1.0
        %v306 = vrcp.pop %v305
        %v307 = vmul.f32 %v305, %v306
        %v308 = vsub.f32 1.0, %v307
        %v309 = vmul.f32 %v306, %v308
        %v310 = vadd.f32 %v306, %v309
        %vm311 = vweird.f32 %v305
        %vm312 = vweird.f32 %v306
        %vm313 = vmor %vm311, %vm312
        %v314 = vsel %vm313, %v306, %v310
        %v315 = vand.u32 2147483647, %v305
        %vm316 = vcmp.eq.f32.partialorder %v315, 8.507059e+37
        %v317 = vand.u32 %v305, 2147483648
        %v318 = vor.u32 1.1754944e-38, %v317
        %v319 = vsel %vm316, %v318, %v314
        %v320 = vmul.f32 1.0, %v319
        %v321 = vperm.slane %v320, 0
        %v322 = vlaneseq
        %v323 = vshrl.u32 %v322, 7
        %325 = vset.pattern.permute.xlu0 %v323
        %326 = vperm.xlu0 %325, %v321
        %v327 = vpop.permute.xlu0 %326
        %v328 = vlaneseq
        %v329 = vshrl.u32 %v328, 7
        %v330 = vadd.s32 %v329, 8
        %331 = vset.pattern.permute.xlu0 %v330
        %332 = vperm.xlu0 %331, %v321
        %v333 = vpop.permute.xlu0 %332
        %v334 = vlaneseq
        %v335 = vshrl.u32 %v334, 7
        %v336 = vadd.s32 %v335, 16
        %337 = vset.pattern.permute.xlu0 %v336
        %338 = vperm.xlu0 %337, %v321
        %v339 = vpop.permute.xlu0 %338
        %v340 = vlaneseq
        %v341 = vshrl.u32 %v340, 7
        %v342 = vadd.s32 %v341, 24
        %343 = vset.pattern.permute.xlu0 %v342
        %344 = vperm.xlu0 %343, %v321
        %v345 = vpop.permute.xlu0 %344
        %v346 = vmul.f32 %v191, %v327
        %v347 = vmul.f32 %v192, %v327
        %v348 = vmul.f32 %v193, %v333
        %v349 = vmul.f32 %v194, %v333
        %v350 = vmul.f32 %v195, %v339
        %v351 = vmul.f32 %v196, %v339
        %v352 = vmul.f32 %v197, %v345
        %v353 = vmul.f32 %v198, %v345
        %354 = vst [vmem:[%s190] sm:$0xff] %v346
        %355 = vst [vmem:[%s190 + $0x8] sm:$0xff] %v347
        %356 = vst [vmem:[%s190 + $0x10] sm:$0xff] %v348
        %357 = vst [vmem:[%s190 + $0x18] sm:$0xff] %v349
        %358 = vst [vmem:[%s190 + $0x20] sm:$0xff] %v350
        %359 = vst [vmem:[%s190 + $0x28] sm:$0xff] %v351
        %360 = vst [vmem:[%s190 + $0x30] sm:$0xff] %v352
        %361 = vst [vmem:[%s190 + $0x38] sm:$0xff] %v353
        %s362 = sand.u32 %s96, 1
        %s363 = scalar_lea.sflag [#allocation4], %s362
        %s364 = sand.u32 %s96, 1
        %s365 = smul.addr %s364, 64
        %s366 = scalar_lea.vmem [#allocation5], %s365
        // Predicated region
        $region37: #{tpu_custom_call.1} parent=31 // pred_check
          %p367 = pneg %p106
        $region38: #{tpu_custom_call.1} parent=31 // pred_check_branch
          %369 = sbr.rel (%p367) target = $region40
        $region39: #{tpu_custom_call.1} parent=31 // pred_region
          %371 = vsyncadd %s363, 0
          %s372 = smul.addr %s20, 8
          %s373 = smul.addr %s372, 8
          %s374 = scalar_lea.hbm %s3, %s373
          %s375 = sshll.u32 %s366, 4
          %s376 = int_to_ptr.vmem [resolvable:$true] %s375
          %s377 = sshll.u32 %s374, 4
          %s378 = int_to_ptr.hbm [resolvable:$true] %s377
          %383 = dma.vmem_to_hbm [thread:$0]  %s376, 1024, %s378, %s363, 256, 256, 16
        $region40: #{tpu_custom_call.1} parent=31 // pred_fallthru
          _
      $region32: #{tpu_custom_call.1} parent=5 // pred_fallthru
        _
      %p384 = scmp.le.s32.totalorder 2, %s15
      // Predicated region
      $region41: #{tpu_custom_call.1} parent=5 // pred_check
        %p385 = pneg %p384
      $region42: #{tpu_custom_call.1} parent=5 // pred_check_branch
        %387 = sbr.rel (%p385) target = $region44
      $region43: #{tpu_custom_call.1} parent=5 // pred_region
        %s388 = ssub.s32 %s15, 2
        // Predicated region
        $region45: #{tpu_custom_call.1} parent=43 // pred_check
          %p389 = pneg %p112
        $region46: #{tpu_custom_call.1} parent=43 // pred_check_branch
          %391 = sbr.rel (%p389) target = $region48
        $region47: #{tpu_custom_call.1} parent=43 // pred_region
          %s392 = sand.u32 %s97, 1
          %s393 = scalar_lea.sflag [#allocation4], %s392
          %s394 = sand.u32 %s97, 1
          %s395 = smul.addr %s394, 64
          %s396 = scalar_lea.vmem [#allocation5], %s395
          %398 = dma.done %s393, 1024
        $region48: #{tpu_custom_call.1} parent=43 // pred_fallthru
          _
      $region44: #{tpu_custom_call.1} parent=5 // pred_fallthru
        _
    $region6: #{tpu_custom_call.1} parent=1 // loop_footer
      %s19 = sadd.s32 1, %s15
    $region7: #{tpu_custom_call.1} parent=1 // loop_footer_branch
      %14 = sbr.rel target = $region3
    $region8: #{tpu_custom_call.1} parent=1 // loop_exit
      _
    %399 = vsyncpa [#allocation3], 1
    %s400 = scalar_lea.sflag [#allocation3], 1
    %401 = vsyncpa %s400, 1
    %402 = vsyncpa [#allocation4], 1
    %s403 = scalar_lea.sflag [#allocation4], 1
    %404 = vsyncpa %s403, 1

</llo_original>
